<compile_context>
chip_gen: v7x
topology: tpu7x:2x2x1
jax: 0.10.0
libtpu: 0.0.40
codegen_flags: <defaults>
</compile_context>

<pallas_src>
import jax
import jax.numpy as jnp
from jax.experimental import pallas as pl
from jax.experimental.pallas import tpu as pltpu

NEG_SLOPE = 0.01  # PyTorch nn.LeakyReLU default negative_slope

_LANE = 512          # lane-dense last dim (multiple of 128 -> unmasked vst)
_MAX_TILE_ROWS = 1024  # 1024 x 512 x 4B = 2 MiB per f32 buffer


def _leaky_relu_kernel(x_ref, o_ref):
    x = x_ref[...]
    # Elementwise LeakyReLU on the VPU; full (TILE_ROWS, 512) vreg-dense tile.
    o_ref[...] = jnp.where(x > 0, x, NEG_SLOPE * x).astype(o_ref.dtype)


def _round_up(x, m):
    return ((x + m - 1) // m) * m


def tree_activation(x):
    """Pallas implementation of TreeActivation(nn.LeakyReLU()).forward.

    x: tuple (data, indexes)
      data:    float array, any shape (applied elementwise)
      indexes: int array, passed through unchanged
    """
    data, indexes = x
    orig_shape = data.shape
    total = int(data.size)

    # ---- build a lane-dense (rows, _LANE) slab, padding the tail ----------
    rows_needed = pl.cdiv(total, _LANE)
    # tile rows: as big as _MAX_TILE_ROWS, but no bigger than needed;
    # multiple of 16 keeps the (sublane, lane) tiling legal for f32 and bf16.
    tile_rows = min(_MAX_TILE_ROWS, _round_up(max(rows_needed, 1), 16))
    padded_rows = _round_up(rows_needed, tile_rows)
    padded_total = padded_rows * _LANE

    flat = jnp.ravel(data)
    if padded_total != total:
        flat = jnp.pad(flat, (0, padded_total - total))
    slab = flat.reshape(padded_rows, _LANE)

    out_slab = pl.pallas_call(
        _leaky_relu_kernel,
        out_shape=jax.ShapeDtypeStruct((padded_rows, _LANE), data.dtype),
        grid=(padded_rows // tile_rows,),
        in_specs=[pl.BlockSpec((tile_rows, _LANE), lambda r: (r, 0))],
        out_specs=pl.BlockSpec((tile_rows, _LANE), lambda r: (r, 0)),
        compiler_params=pltpu.CompilerParams(
            dimension_semantics=("parallel",),  # lets v7x shard rows over 2 TCs
        ),
    )(slab)

    activated = out_slab.reshape(-1)[:total].reshape(orig_shape)

    # indexes: pure pass-through, no compute needed in the kernel.
    return (activated, indexes)


if __name__ == "__main__":
    key = jax.random.PRNGKey(0)
    kd, ki = jax.random.split(key)

    B, C, N = 2, 4, 16  # batch, channels, tree nodes
    data = jax.random.normal(kd, (B, C, N), dtype=jnp.float32)
    # tree-conv gather indices: shape (B, 3*N, 1), integer dtype
    indexes = jax.random.randint(ki, (B, 3 * N, 1), 0, N, dtype=jnp.int32)

    out_data, out_idx = tree_activation((data, indexes))
    jax.block_until_ready(out_data)
    jax.block_until_ready(out_idx)

    # reference check
    ref = jnp.where(data > 0, data, NEG_SLOPE * data)
    assert out_data.shape == data.shape, "shape mismatch"
    assert jnp.allclose(out_data, ref, atol=1e-6), "activation mismatch"
    assert (out_idx == indexes).all(), "indexes must pass through unchanged"

    print("KERNEL_OK")
</pallas_src>

<mosaic_0001>
module attributes {stable_mosaic.version = 11 : i64} {
  func.func @_leaky_relu_kernel(%arg0: i32, %arg1: memref<16x512xf32, #tpu.memory_space<vmem>>, %arg2: memref<16x512xf32, #tpu.memory_space<vmem>>) attributes {dimension_semantics = [#tpu.dimension_semantics<parallel>], iteration_bounds = array<i64: 1>, scalar_prefetch = 0 : i64, scratch_operands = 0 : i64, tpu.core_type = #tpu.core_type<tc>, window_params = [{transform_indices = @transform_0, window_bounds = array<i64: 16, 512>}, {transform_indices = @transform_1, window_bounds = array<i64: 16, 512>}]} {
    %c0 = arith.constant 0 : index
    %c0_0 = arith.constant 0 : index
    %0 = vector.load %arg1[%c0, %c0_0] : memref<16x512xf32, #tpu.memory_space<vmem>>, vector<16x512xf32>
    %cst = arith.constant 0.000000e+00 : f32
    %1 = vector.broadcast %cst : f32 to vector<16x512xf32>
    %2 = arith.cmpf ogt, %0, %1 : vector<16x512xf32>
    %cst_1 = arith.constant 0.00999999977 : f32
    %3 = vector.broadcast %cst_1 : f32 to vector<16x512xf32>
    %4 = arith.mulf %3, %0 : vector<16x512xf32>
    %5 = arith.select %2, %0, %4 : vector<16x512xi1>, vector<16x512xf32>
    %c0_2 = arith.constant 0 : index
    %c0_3 = arith.constant 0 : index
    %6 = vector.load %arg2[%c0_2, %c0_3] : memref<16x512xf32, #tpu.memory_space<vmem>>, vector<16x512xf32>
    tpu.vector_store %arg2[%c0_2, %c0_3], %5 {strides = array<i32>} : memref<16x512xf32, #tpu.memory_space<vmem>>, vector<16x512xf32>,
    return
  }
  func.func @transform_0(%arg0: i32) -> (i32, i32) {
    %c0_i32 = arith.constant 0 : i32
    %c0_i32_0 = arith.constant 0 : i32
    return %arg0, %c0_i32 : i32, i32
  }
  func.func @transform_1(%arg0: i32) -> (i32, i32) {
    %c0_i32 = arith.constant 0 : i32
    %c0_i32_0 = arith.constant 0 : i32
    return %arg0, %c0_i32 : i32, i32
  }
}

</mosaic_0001>

<llo_original>
// kernel: tpu_custom_call.1
$region0: #{tpu_custom_call.1}
  #allocation0 [shape = 'u32[]', space=smem, size = 0x4, offset = 0x4, fixed_abs, tag = 'smem constant byte address 0x4 - core index']
  #allocation1 [shape = 'u32[144,128]{1,0:T(1,128)}', space=vmem, size = 0x12000, scoped, tag = 'internal scratch']
  %s0 = inlined_call_operand.hbm [shape: f32[16,512], index: 0, kind: input, shape index: {}]
  %s1 = inlined_call_operand.hbm [shape: f32[16,512], index: 1, kind: output, shape index: {}]
  %s2 = sld [smem:[#allocation0]]
  $region18: #{tpu_custom_call.1} parent=0
    _
  %s4 = ssub.s32 1, %s2
  %s5 = scalar_select 0, %s4, %s2
  $region1: #{tpu_custom_call.1} parent=0
    #allocation2 [shape = 'u8[32768]{0}', space=vmem, size = 0x8000, scoped, tag = 'input window, operand 0, single buffered']
    #allocation3 [shape = 's32[1]{0}', space=sflag, size = 0x4, scoped, tag = 'scoped memory for tpu_custom_call.1']
    #allocation4 [shape = 's32[1]{0}', space=sflag, size = 0x4, scoped, tag = 'scoped memory for tpu_custom_call.1']
    #allocation5 [shape = 'u8[32768]{0}', space=vmem, size = 0x8000, scoped, tag = 'output window, operand 0, single buffered']
    %6 = vsyncpa [#allocation3], 0
    %7 = vsyncpa [#allocation4], 0
    // Predicated region
    $region2: #{tpu_custom_call.1} parent=1 // pred_check
      _
    $region3: #{tpu_custom_call.1} parent=1 // pred_check_branch
      %9 = sbr.rel (0) target = $region5
    $region4: #{tpu_custom_call.1} parent=1 // pred_region
      %s11 = ssub.s32 1024, 1024
      %12 = vsyncadd [#allocation3], %s11
      %s13 = sshll.u32 [#allocation2], 4
      %s14 = int_to_ptr.vmem [resolvable:$true] %s13
      %19 = dma.hbm_to_vmem [thread:$0]  %s0, 1024, %s14, [#allocation3], 512, 512, 32
    $region5: #{tpu_custom_call.1} parent=1 // pred_fallthru
      _
    // Predicated region
    $region6: #{tpu_custom_call.1} parent=1 // pred_check
      _
    $region7: #{tpu_custom_call.1} parent=1 // pred_check_branch
      %21 = sbr.rel (0) target = $region9
    $region8: #{tpu_custom_call.1} parent=1 // pred_region
      %22 = dma.done [#allocation3], 1024
    $region9: #{tpu_custom_call.1} parent=1 // pred_fallthru
      _
    %v23 = vld [vmem:[#allocation2] sm:$0xff]
    %v24 = vld [vmem:[#allocation2 + $0x8] sm:$0xff]
    %v25 = vld [vmem:[#allocation2 + $0x10] sm:$0xff]
    %v26 = vld [vmem:[#allocation2 + $0x18] sm:$0xff]
    %v27 = vld [vmem:[#allocation2 + $0x20] sm:$0xff]
    %v28 = vld [vmem:[#allocation2 + $0x28] sm:$0xff]
    %v29 = vld [vmem:[#allocation2 + $0x30] sm:$0xff]
    %v30 = vld [vmem:[#allocation2 + $0x38] sm:$0xff]
    %vm31 = vcmp.gt.f32.partialorder %v23, 0.0
    %vm32 = vcmp.gt.f32.partialorder %v24, 0.0
    %vm33 = vcmp.gt.f32.partialorder %v25, 0.0
    %vm34 = vcmp.gt.f32.partialorder %v26, 0.0
    %vm35 = vcmp.gt.f32.partialorder %v27, 0.0
    %vm36 = vcmp.gt.f32.partialorder %v28, 0.0
    %vm37 = vcmp.gt.f32.partialorder %v29, 0.0
    %vm38 = vcmp.gt.f32.partialorder %v30, 0.0
    %v39 = vmul.f32 %v23, 0.01
    %v40 = vmul.f32 %v24, 0.01
    %v41 = vmul.f32 %v25, 0.01
    %v42 = vmul.f32 %v26, 0.01
    %v43 = vmul.f32 %v27, 0.01
    %v44 = vmul.f32 %v28, 0.01
    %v45 = vmul.f32 %v29, 0.01
    %v46 = vmul.f32 %v30, 0.01
    %v47 = vsel %vm31, %v23, %v39
    %v48 = vsel %vm32, %v24, %v40
    %v49 = vsel %vm33, %v25, %v41
    %v50 = vsel %vm34, %v26, %v42
    %v51 = vsel %vm35, %v27, %v43
    %v52 = vsel %vm36, %v28, %v44
    %v53 = vsel %vm37, %v29, %v45
    %v54 = vsel %vm38, %v30, %v46
    %55 = vst [vmem:[#allocation5] sm:$0xff] %v47
    %56 = vst [vmem:[#allocation5 + $0x8] sm:$0xff] %v48
    %57 = vst [vmem:[#allocation5 + $0x10] sm:$0xff] %v49
    %58 = vst [vmem:[#allocation5 + $0x18] sm:$0xff] %v50
    %59 = vst [vmem:[#allocation5 + $0x20] sm:$0xff] %v51
    %60 = vst [vmem:[#allocation5 + $0x28] sm:$0xff] %v52
    %61 = vst [vmem:[#allocation5 + $0x30] sm:$0xff] %v53
    %62 = vst [vmem:[#allocation5 + $0x38] sm:$0xff] %v54
    // Predicated region
    $region10: #{tpu_custom_call.1} parent=1 // pred_check
      _
    $region11: #{tpu_custom_call.1} parent=1 // pred_check_branch
      %64 = sbr.rel (0) target = $region13
    $region12: #{tpu_custom_call.1} parent=1 // pred_region
      %s66 = ssub.s32 1024, 1024
      %67 = vsyncadd [#allocation4], %s66
      %s68 = sshll.u32 [#allocation5], 4
      %s69 = int_to_ptr.vmem [resolvable:$true] %s68
      %74 = dma.vmem_to_hbm [thread:$0]  %s69, 1024, %s1, [#allocation4], 512, 512, 32
    $region13: #{tpu_custom_call.1} parent=1 // pred_fallthru
      _
    // Predicated region
    $region14: #{tpu_custom_call.1} parent=1 // pred_check
      _
    $region15: #{tpu_custom_call.1} parent=1 // pred_check_branch
      %76 = sbr.rel (0) target = $region17
    $region16: #{tpu_custom_call.1} parent=1 // pred_region
      %77 = dma.done [#allocation4], 1024
    $region17: #{tpu_custom_call.1} parent=1 // pred_fallthru
      _
    %78 = vsyncpa [#allocation3], 1
    %79 = vsyncpa [#allocation4], 1

</llo_original>
